<compile_context>
chip_gen: v6e
topology: v6e:2x2x1
jax: 0.10.0
libtpu: 0.0.40
codegen_flags: <defaults>
</compile_context>

<pallas_src>
import functools
import math

import jax
import jax.numpy as jnp
from jax.experimental import pallas as pl
from jax.experimental.pallas import tpu as pltpu


# ---------------------------------------------------------------------------
# Module config / init helpers (match the PyTorch __init__)
# ---------------------------------------------------------------------------
def _compute_hidden_dim(hidden_dim: int, multiple_of: int, ffn_dim_multiplier):
    hidden_dim = int(2 * hidden_dim / 3)
    if ffn_dim_multiplier is not None:
        hidden_dim = int(ffn_dim_multiplier * hidden_dim)
    hidden_dim = multiple_of * ((hidden_dim + multiple_of - 1) // multiple_of)
    return hidden_dim


def _xavier_uniform(key, fan_in: int, fan_out: int, dtype=jnp.float32):
    # Matches nn.init.xavier_uniform_ on a (fan_out, fan_in) Linear weight,
    # generated directly in the pre-transposed [in, out] layout.
    bound = math.sqrt(6.0 / (fan_in + fan_out))
    return jax.random.uniform(key, (fan_in, fan_out), dtype=dtype,
                              minval=-bound, maxval=bound)


def _round_up(a: int, b: int) -> int:
    return (a + b - 1) // b * b


def _cdiv(a: int, b: int) -> int:
    return (a + b - 1) // b


# ---------------------------------------------------------------------------
# Trace-time hardware queries (cached; robust fallbacks)
# ---------------------------------------------------------------------------
_VMEM_BYTES = None


def _vmem_capacity_bytes() -> int:
    global _VMEM_BYTES
    if _VMEM_BYTES is None:
        try:
            _VMEM_BYTES = int(pltpu.get_tpu_info().vmem_capacity_bytes)
        except Exception:
            _VMEM_BYTES = 64 * 1024 * 1024   # conservative (v7x physical VMEM)
    return _VMEM_BYTES


def _num_tensorcores_per_chip() -> int:
    try:
        kind = jax.devices()[0].device_kind.lower()
        if "v7" in kind:
            return 2
    except Exception:
        pass
    return 1


# ---------------------------------------------------------------------------
# Pallas kernel
# ---------------------------------------------------------------------------
def _ffn_kernel(x_ref, w1_ref, w3_ref, w2_ref, o_ref, acc_ref):
    # x_ref:   (tm, dim_p)        activations tile (native dtype)
    # w1_ref:  (dim_p, th)        w1 columns for hidden tile k
    # w3_ref:  (dim_p, th)        w3 columns for hidden tile k
    # w2_ref:  (th, dim_p)        w2 rows for hidden tile k
    # o_ref:   (tm, dim_p)        output tile
    # acc_ref: (tm, dim_p) f32    VMEM accumulator across hidden tiles
    k = pl.program_id(1)

    # Up-projections on the MXU, f32 accumulation (no operand upcast).
    h1 = jnp.dot(x_ref[...], w1_ref[...], preferred_element_type=jnp.float32)
    h3 = jnp.dot(x_ref[...], w3_ref[...], preferred_element_type=jnp.float32)
    g = (h1 * jax.nn.sigmoid(h1)) * h3                        # SiLU gate, f32

    # Down-projection partial sum for this hidden tile.
    part = jnp.dot(g.astype(w2_ref.dtype), w2_ref[...],
                   preferred_element_type=jnp.float32)

    @pl.when(k == 0)
    def _():
        acc_ref[...] = part            # write-through: no zero-init round trip

    @pl.when(k != 0)
    def _():
        acc_ref[...] += part

    @pl.when(k == pl.num_programs(1) - 1)
    def _():
        o_ref[...] = acc_ref[...].astype(o_ref.dtype)


# ---------------------------------------------------------------------------
# Wrapper
# ---------------------------------------------------------------------------
@functools.partial(jax.jit, static_argnames=("tm", "th"))
def feed_forward(x, w1, w3, w2, *, tm=None, th=None):
    """x: [..., dim];  w1/w3: [dim, hidden];  w2: [hidden, dim]."""
    orig_shape = x.shape
    dim = orig_shape[-1]
    hidden = w1.shape[1]

    x2d = x.reshape(-1, dim)
    m = x2d.shape[0]

    x_item = jnp.dtype(x.dtype).itemsize
    w_item = jnp.dtype(w1.dtype).itemsize

    # --- feature dim: lane-dense (multiple of 128) ---------------------------
    dim_p = max(_round_up(dim, 128), 128)

    # --- row tile -------------------------------------------------------------
    # Large tm raises arithmetic intensity (weights are re-streamed once per
    # M tile); small inputs are not over-padded.
    if tm is None:
        if m <= 256:
            tm = max(8, _round_up(m, 8))
        elif m <= 1024:
            tm = 256
        else:
            tm = 512
    # 2-TC chips (v7x): make sure the "parallel" axis has >= 2 iterations.
    if _num_tensorcores_per_chip() >= 2 and m >= 16 and _round_up(m, tm) // tm == 1:
        tm = max(8, _round_up(_cdiv(m, 2), 8))
    m_p = _round_up(m, tm)
    n_m = m_p // tm

    # --- hidden tile from the VMEM budget --------------------------------------
    vmem_budget = int(_vmem_capacity_bytes() * 0.75)      # ~96 MiB v5e/v6e, ~48 MiB v7x
    # x + out double-buffered (native dtype) + f32 accumulator scratch.
    act_bytes = tm * dim_p * (2 * x_item + 2 * x_item + 4)
    if th is None:
        weight_budget = max(vmem_budget - act_bytes, 6 * dim_p * 128 * w_item)
        # Per grid step, double-buffered weights: 2 * (w1 + w3 + w2) tiles.
        th_cap = weight_budget // (6 * dim_p * w_item)
        th_cap = max(128, (th_cap // 128) * 128)
        th_cap = min(th_cap, 2048, _round_up(hidden, 128))
        # Choose nk first so hidden is never (nearly) doubled by padding.
        nk = _cdiv(hidden, th_cap)
        th = _round_up(_cdiv(hidden, nk), 128)
    nk = _cdiv(hidden, th)
    hidden_p = nk * th

    # --- pad only when actually needed (zero padding is exact for SwiGLU) ------
    # TODO(synk): in a real model, pad/cache the weights once at init instead of
    # per call; here it only triggers for misaligned dims.
    xp = x2d
    if m_p != m or dim_p != dim:
        xp = jnp.pad(x2d, ((0, m_p - m), (0, dim_p - dim)))
    if dim_p != dim or hidden_p != hidden:
        w1p = jnp.pad(w1, ((0, dim_p - dim), (0, hidden_p - hidden)))
        w3p = jnp.pad(w3, ((0, dim_p - dim), (0, hidden_p - hidden)))
        w2p = jnp.pad(w2, ((0, hidden_p - hidden), (0, dim_p - dim)))
    else:
        w1p, w3p, w2p = w1, w3, w2

    # --- cost estimate (advisory; weights are re-streamed once per M tile) -----
    cost = pl.CostEstimate(
        flops=6 * m_p * dim_p * hidden_p,
        transcendentals=m_p * hidden_p,
        bytes_accessed=(x_item * 2 * m_p * dim_p                 # x in, y out
                        + n_m * w_item * 3 * dim_p * hidden_p),  # w1+w3+w2 per M tile
    )

    out = pl.pallas_call(
        _ffn_kernel,
        out_shape=jax.ShapeDtypeStruct((m_p, dim_p), x.dtype),
        grid_spec=pltpu.PrefetchScalarGridSpec(
            num_scalar_prefetch=0,
            grid=(n_m, nk),
            in_specs=[
                pl.BlockSpec((tm, dim_p), lambda i, k: (i, 0)),   # x tile
                pl.BlockSpec((dim_p, th), lambda i, k: (0, k)),   # w1_k
                pl.BlockSpec((dim_p, th), lambda i, k: (0, k)),   # w3_k
                pl.BlockSpec((th, dim_p), lambda i, k: (k, 0)),   # w2_k
            ],
            out_specs=pl.BlockSpec((tm, dim_p), lambda i, k: (i, 0)),
            scratch_shapes=[pltpu.VMEM((tm, dim_p), jnp.float32)],
        ),
        compiler_params=pltpu.CompilerParams(
            dimension_semantics=("parallel", "arbitrary"),
            vmem_limit_bytes=vmem_budget,
        ),
        cost_estimate=cost,
    )(xp, w1p, w3p, w2p)

    return out[:m, :dim].reshape(orig_shape)


# ---------------------------------------------------------------------------
# Test
# ---------------------------------------------------------------------------
def _reference(x, w1, w3, w2):
    h1 = x @ w1
    h3 = x @ w3
    return ((h1 * jax.nn.sigmoid(h1)) * h3) @ w2


if __name__ == "__main__":
    key = jax.random.PRNGKey(0)

    # --- Test 1: module's toy config (dim=64 -> padded to 128 lanes) --------
    dim = 64
    hidden = _compute_hidden_dim(128, 128, None)          # -> 128
    k1, k2, k3, kx, key = jax.random.split(key, 5)
    w1 = _xavier_uniform(k1, dim, hidden)                 # [dim, hidden]
    w3 = _xavier_uniform(k3, dim, hidden)
    w2 = _xavier_uniform(k2, hidden, dim)                 # [hidden, dim]

    batch, seq = 2, 8
    x = jax.random.normal(kx, (batch, seq, dim), dtype=jnp.float32)

    y = jax.block_until_ready(feed_forward(x, w1, w3, w2))
    y_ref = _reference(x, w1, w3, w2)
    assert y.shape == (batch, seq, dim)
    assert jnp.allclose(y, y_ref, atol=1e-5, rtol=1e-5)

    # --- Test 2: exercise hidden tiling (nk=2) and multiple M tiles ---------
    dim2 = 128
    hidden2 = _compute_hidden_dim(384, 128, None)         # -> 256
    k1, k2, k3, kx, key = jax.random.split(key, 5)
    w1b = _xavier_uniform(k1, dim2, hidden2)
    w3b = _xavier_uniform(k3, dim2, hidden2)
    w2b = _xavier_uniform(k2, hidden2, dim2)

    xb = jax.random.normal(kx, (2, 96, dim2), dtype=jnp.float32)  # m=192
    yb = jax.block_until_ready(feed_forward(xb, w1b, w3b, w2b, tm=64, th=128))
    yb_ref = _reference(xb, w1b, w3b, w2b)
    assert yb.shape == xb.shape
    assert jnp.allclose(yb, yb_ref, atol=1e-4, rtol=1e-4)

    # --- Test 3: bf16 operand path (recommended production dtype) -----------
    w1c = w1b.astype(jnp.bfloat16)
    w3c = w3b.astype(jnp.bfloat16)
    w2c = w2b.astype(jnp.bfloat16)
    xc = xb.astype(jnp.bfloat16)
    yc = jax.block_until_ready(feed_forward(xc, w1c, w3c, w2c))
    yc_ref = _reference(xc.astype(jnp.float32), w1c.astype(jnp.float32),
                        w3c.astype(jnp.float32), w2c.astype(jnp.float32))
    assert yc.shape == xb.shape
    assert jnp.allclose(yc.astype(jnp.float32), yc_ref, atol=5e-2, rtol=5e-2)

    print("KERNEL_OK")
</pallas_src>

<mosaic_0001>
module attributes {stable_mosaic.version = 11 : i64} {
  func.func @_ffn_kernel(%arg0: i32, %arg1: i32, %arg2: memref<16x128xf32, #tpu.memory_space<vmem>>, %arg3: memref<128x128xf32, #tpu.memory_space<vmem>>, %arg4: memref<128x128xf32, #tpu.memory_space<vmem>>, %arg5: memref<128x128xf32, #tpu.memory_space<vmem>>, %arg6: memref<16x128xf32, #tpu.memory_space<vmem>>, %arg7: memref<16x128xf32, #tpu.memory_space<vmem>>) attributes {dimension_semantics = [#tpu.dimension_semantics<parallel>, #tpu.dimension_semantics<arbitrary>], iteration_bounds = array<i64: 1, 1>, scalar_prefetch = 0 : i64, scratch_operands = 1 : i64, tpu.core_type = #tpu.core_type<tc>, window_params = [{transform_indices = @transform_0, window_bounds = array<i64: 16, 128>}, {transform_indices = @transform_1, window_bounds = array<i64: 128, 128>}, {transform_indices = @transform_2, window_bounds = array<i64: 128, 128>}, {transform_indices = @transform_3, window_bounds = array<i64: 128, 128>}, {transform_indices = @transform_4, window_bounds = array<i64: 16, 128>}]} {
    %c0 = arith.constant 0 : index
    %c0_0 = arith.constant 0 : index
    %0 = vector.load %arg2[%c0, %c0_0] : memref<16x128xf32, #tpu.memory_space<vmem>>, vector<16x128xf32>
    %c0_1 = arith.constant 0 : index
    %c0_2 = arith.constant 0 : index
    %1 = vector.load %arg3[%c0_1, %c0_2] : memref<128x128xf32, #tpu.memory_space<vmem>>, vector<128x128xf32>
    %cst = arith.constant dense<0.000000e+00> : vector<16x128xf32>
    %2 = tpu.matmul %0, %1, %cst {dimension_numbers = #tpu.dot_dimension_numbers<[1], [0], [0], [1], [0, 0, 1, 1], [], []>} : vector<16x128xf32>, vector<128x128xf32>, vector<16x128xf32> -> vector<16x128xf32>
    %c0_3 = arith.constant 0 : index
    %c0_4 = arith.constant 0 : index
    %3 = vector.load %arg2[%c0_3, %c0_4] : memref<16x128xf32, #tpu.memory_space<vmem>>, vector<16x128xf32>
    %c0_5 = arith.constant 0 : index
    %c0_6 = arith.constant 0 : index
    %4 = vector.load %arg4[%c0_5, %c0_6] : memref<128x128xf32, #tpu.memory_space<vmem>>, vector<128x128xf32>
    %cst_7 = arith.constant dense<0.000000e+00> : vector<16x128xf32>
    %5 = tpu.matmul %3, %4, %cst_7 {dimension_numbers = #tpu.dot_dimension_numbers<[1], [0], [0], [1], [0, 0, 1, 1], [], []>} : vector<16x128xf32>, vector<128x128xf32>, vector<16x128xf32> -> vector<16x128xf32>
    %6 = arith.negf %2 : vector<16x128xf32>
    %7 = math.exp %6 : vector<16x128xf32>
    %cst_8 = arith.constant 1.000000e+00 : f32
    %8 = vector.broadcast %cst_8 : f32 to vector<16x128xf32>
    %9 = arith.addf %8, %7 : vector<16x128xf32>
    %10 = arith.divf %8, %9 : vector<16x128xf32>
    %11 = arith.mulf %2, %10 : vector<16x128xf32>
    %12 = arith.mulf %11, %5 : vector<16x128xf32>
    %c0_9 = arith.constant 0 : index
    %c0_10 = arith.constant 0 : index
    %13 = vector.load %arg5[%c0_9, %c0_10] : memref<128x128xf32, #tpu.memory_space<vmem>>, vector<128x128xf32>
    %cst_11 = arith.constant dense<0.000000e+00> : vector<16x128xf32>
    %14 = tpu.matmul %12, %13, %cst_11 {dimension_numbers = #tpu.dot_dimension_numbers<[1], [0], [0], [1], [0, 0, 1, 1], [], []>} : vector<16x128xf32>, vector<128x128xf32>, vector<16x128xf32> -> vector<16x128xf32>
    %c0_i32 = arith.constant 0 : i32
    %15 = arith.cmpi eq, %arg1, %c0_i32 : i32
    %16 = arith.extui %15 : i1 to i32
    %c0_i32_12 = arith.constant 0 : i32
    %17 = arith.cmpi ne, %16, %c0_i32_12 : i32
    scf.if %17 {
      %c0_17 = arith.constant 0 : index
      %c0_18 = arith.constant 0 : index
      %24 = vector.load %arg7[%c0_17, %c0_18] : memref<16x128xf32, #tpu.memory_space<vmem>>, vector<16x128xf32>
      tpu.vector_store %arg7[%c0_17, %c0_18], %14 {strides = array<i32>} : memref<16x128xf32, #tpu.memory_space<vmem>>, vector<16x128xf32>,
    } else {
    }
    %c0_i32_13 = arith.constant 0 : i32
    %18 = arith.cmpi ne, %arg1, %c0_i32_13 : i32
    %19 = arith.extui %18 : i1 to i32
    %c0_i32_14 = arith.constant 0 : i32
    %20 = arith.cmpi ne, %19, %c0_i32_14 : i32
    scf.if %20 {
      %c0_17 = arith.constant 0 : index
      %c0_18 = arith.constant 0 : index
      %24 = vector.load %arg7[%c0_17, %c0_18] : memref<16x128xf32, #tpu.memory_space<vmem>>, vector<16x128xf32>
      %25 = arith.addf %24, %14 : vector<16x128xf32>
      %c0_19 = arith.constant 0 : index
      %c0_20 = arith.constant 0 : index
      %26 = vector.load %arg7[%c0_19, %c0_20] : memref<16x128xf32, #tpu.memory_space<vmem>>, vector<16x128xf32>
      tpu.vector_store %arg7[%c0_19, %c0_20], %25 {strides = array<i32>} : memref<16x128xf32, #tpu.memory_space<vmem>>, vector<16x128xf32>,
    } else {
    }
    %c0_i32_15 = arith.constant 0 : i32
    %21 = arith.cmpi eq, %arg1, %c0_i32_15 : i32
    %22 = arith.extui %21 : i1 to i32
    %c0_i32_16 = arith.constant 0 : i32
    %23 = arith.cmpi ne, %22, %c0_i32_16 : i32
    scf.if %23 {
      %c0_17 = arith.constant 0 : index
      %c0_18 = arith.constant 0 : index
      %24 = vector.load %arg7[%c0_17, %c0_18] : memref<16x128xf32, #tpu.memory_space<vmem>>, vector<16x128xf32>
      %c0_19 = arith.constant 0 : index
      %c0_20 = arith.constant 0 : index
      %25 = vector.load %arg6[%c0_19, %c0_20] : memref<16x128xf32, #tpu.memory_space<vmem>>, vector<16x128xf32>
      tpu.vector_store %arg6[%c0_19, %c0_20], %24 {strides = array<i32>} : memref<16x128xf32, #tpu.memory_space<vmem>>, vector<16x128xf32>,
    } else {
    }
    return
  }
  func.func @transform_0(%arg0: i32, %arg1: i32) -> (i32, i32) {
    %c0_i32 = arith.constant 0 : i32
    %c0_i32_0 = arith.constant 0 : i32
    return %arg0, %c0_i32 : i32, i32
  }
  func.func @transform_1(%arg0: i32, %arg1: i32) -> (i32, i32) {
    %c0_i32 = arith.constant 0 : i32
    %c0_i32_0 = arith.constant 0 : i32
    return %c0_i32, %arg1 : i32, i32
  }
  func.func @transform_2(%arg0: i32, %arg1: i32) -> (i32, i32) {
    %c0_i32 = arith.constant 0 : i32
    %c0_i32_0 = arith.constant 0 : i32
    return %c0_i32, %arg1 : i32, i32
  }
  func.func @transform_3(%arg0: i32, %arg1: i32) -> (i32, i32) {
    %c0_i32 = arith.constant 0 : i32
    %c0_i32_0 = arith.constant 0 : i32
    return %arg1, %c0_i32 : i32, i32
  }
  func.func @transform_4(%arg0: i32, %arg1: i32) -> (i32, i32) {
    %c0_i32 = arith.constant 0 : i32
    %c0_i32_0 = arith.constant 0 : i32
    return %arg0, %c0_i32 : i32, i32
  }
}

</mosaic_0001>

<llo_original>
// kernel: feed_forward.1
$region0: #{feed_forward.1}
  #allocation0 [shape = 'u32[]', space=smem, size = 0x4, offset = 0x4, fixed_abs, tag = 'smem constant byte address 0x4 - core index']
  #allocation1 [shape = 'u32[144,128]{1,0:T(1,128)}', space=vmem, size = 0x12000, scoped, tag = 'internal scratch']
  #allocation2 [shape = 'f32[16,128]{1,0:T(8,128)}', space=vmem, size = 0x2000, scoped, tag = 'scratch operand']
  %s0 = inlined_call_operand.vmem [shape: f32[16,128], index: 0, kind: input, shape index: {}]
  %s1 = inlined_call_operand.vmem [shape: f32[128,128], index: 1, kind: input, shape index: {}]
  %s2 = inlined_call_operand.vmem [shape: f32[128,128], index: 2, kind: input, shape index: {}]
  %s3 = inlined_call_operand.vmem [shape: f32[128,128], index: 3, kind: input, shape index: {}]
  %s4 = inlined_call_operand.vmem [shape: f32[16,128], index: 4, kind: output, shape index: {}]
  %s5 = sld [smem:[#allocation0]]
  $region38: #{feed_forward.1} parent=0
    _
  %s7 = ssub.s32 1, %s5
  %s8 = scalar_select 0, %s7, %s5
  // Predicated region
  $region2: #{feed_forward.1} parent=0 // pred_check
    _
  $region3: #{feed_forward.1} parent=0 // pred_check_branch
    %10 = sbr.rel (0) target = $region5
  $region4: #{feed_forward.1} parent=0 // pred_region
    _
  $region5: #{feed_forward.1} parent=0 // pred_fallthru
    _
  // Predicated region
  $region6: #{feed_forward.1} parent=0 // pred_check
    _
  $region7: #{feed_forward.1} parent=0 // pred_check_branch
    %12 = sbr.rel (0) target = $region9
  $region8: #{feed_forward.1} parent=0 // pred_region
    _
  $region9: #{feed_forward.1} parent=0 // pred_fallthru
    _
  // Predicated region
  $region10: #{feed_forward.1} parent=0 // pred_check
    _
  $region11: #{feed_forward.1} parent=0 // pred_check_branch
    %14 = sbr.rel (0) target = $region13
  $region12: #{feed_forward.1} parent=0 // pred_region
    _
  $region13: #{feed_forward.1} parent=0 // pred_fallthru
    _
  // Predicated region
  $region14: #{feed_forward.1} parent=0 // pred_check
    _
  $region15: #{feed_forward.1} parent=0 // pred_check_branch
    %16 = sbr.rel (0) target = $region17
  $region16: #{feed_forward.1} parent=0 // pred_region
    _
  $region17: #{feed_forward.1} parent=0 // pred_fallthru
    _
  %v17 = vld [vmem:[%s0] sm:$0xff]
  %v18 = vld [vmem:[%s0 + $0x8] sm:$0xff]
  %v19 = vld [vmem:[%s1] sm:$0xff]
  %v20 = vld [vmem:[%s1 + $0x8] sm:$0xff]
  %v21 = vld [vmem:[%s1 + $0x10] sm:$0xff]
  %v22 = vld [vmem:[%s1 + $0x18] sm:$0xff]
  %v23 = vld [vmem:[%s1 + $0x20] sm:$0xff]
  %v24 = vld [vmem:[%s1 + $0x28] sm:$0xff]
  %v25 = vld [vmem:[%s1 + $0x30] sm:$0xff]
  %v26 = vld [vmem:[%s1 + $0x38] sm:$0xff]
  %v27 = vld [vmem:[%s1 + $0x40] sm:$0xff]
  %v28 = vld [vmem:[%s1 + $0x48] sm:$0xff]
  %v29 = vld [vmem:[%s1 + $0x50] sm:$0xff]
  %v30 = vld [vmem:[%s1 + $0x58] sm:$0xff]
  %v31 = vld [vmem:[%s1 + $0x60] sm:$0xff]
  %v32 = vld [vmem:[%s1 + $0x68] sm:$0xff]
  %v33 = vld [vmem:[%s1 + $0x70] sm:$0xff]
  %v34 = vld [vmem:[%s1 + $0x78] sm:$0xff]
  %35 = vmatprep.subr.mxu0 0.0
  %36 = vmatpush1.msra.mxu0 %v34
  %37 = vmatprep.subr.mxu0 0.0
  %38 = vmatpush1.msra.mxu0 %v33
  %39 = vmatprep.subr.mxu0 0.0
  %40 = vmatpush1.msra.mxu0 %v32
  %41 = vmatprep.subr.mxu0 0.0
  %42 = vmatpush1.msra.mxu0 %v31
  %43 = vmatprep.subr.mxu0 0.0
  %44 = vmatpush1.msra.mxu0 %v30
  %45 = vmatprep.subr.mxu0 0.0
  %46 = vmatpush1.msra.mxu0 %v29
  %47 = vmatprep.subr.mxu0 0.0
  %48 = vmatpush1.msra.mxu0 %v28
  %49 = vmatprep.subr.mxu0 0.0
  %50 = vmatpush1.msra.mxu0 %v27
  %51 = vmatprep.subr.mxu0 0.0
  %52 = vmatpush1.msra.mxu0 %v26
  %53 = vmatprep.subr.mxu0 0.0
  %54 = vmatpush1.msra.mxu0 %v25
  %55 = vmatprep.subr.mxu0 0.0
  %56 = vmatpush1.msra.mxu0 %v24
  %57 = vmatprep.subr.mxu0 0.0
  %58 = vmatpush1.msra.mxu0 %v23
  %59 = vmatprep.subr.mxu0 0.0
  %60 = vmatpush1.msra.mxu0 %v22
  %61 = vmatprep.subr.mxu0 0.0
  %62 = vmatpush1.msra.mxu0 %v21
  %63 = vmatprep.subr.mxu0 0.0
  %64 = vmatpush1.msra.mxu0 %v20
  %65 = vmatprep.subr.mxu0 0.0
  %66 = vmatpush1.msra.mxu0 %v19
  %67 = vmatprep.subr.mxu0 0.0
  %68 = vmatpush2.msra.mxu0 0.0
  %69 = vmatprep.subr.mxu0 0.0
  %70 = vmatpush2.msra.mxu0 0.0
  %71 = vmatprep.subr.mxu0 0.0
  %72 = vmatpush2.msra.mxu0 0.0
  %73 = vmatprep.subr.mxu0 0.0
  %74 = vmatpush2.msra.mxu0 0.0
  %75 = vmatprep.subr.mxu0 0.0
  %76 = vmatpush2.msra.mxu0 0.0
  %77 = vmatprep.subr.mxu0 0.0
  %78 = vmatpush2.msra.mxu0 0.0
  %79 = vmatprep.subr.mxu0 0.0
  %80 = vmatpush2.msra.mxu0 0.0
  %81 = vmatprep.subr.mxu0 0.0
  %82 = vmatpush2.msra.mxu0 0.0
  %83 = vmatprep.subr.mxu0 0.0
  %84 = vmatpush2.msra.mxu0 0.0
  %85 = vmatprep.subr.mxu0 0.0
  %86 = vmatpush2.msra.mxu0 0.0
  %87 = vmatprep.subr.mxu0 0.0
  %88 = vmatpush2.msra.mxu0 0.0
  %89 = vmatprep.subr.mxu0 0.0
  %90 = vmatpush2.msra.mxu0 0.0
  %91 = vmatprep.subr.mxu0 0.0
  %92 = vmatpush2.msra.mxu0 0.0
  %93 = vmatprep.subr.mxu0 0.0
  %94 = vmatpush2.msra.mxu0 0.0
  %95 = vmatprep.subr.mxu0 0.0
  %96 = vmatpush2.msra.mxu0 0.0
  %97 = vmatprep.subr.mxu0 0.0
  %98 = vmatpush2.msra.mxu0 0.0
  %99 = vmatprep.mubr.f32.mxu0 0.0
  %100 = vmatmul.mubr.f32.gmra.mxu0 %v17
  %v101 = vpop.f32.mrf.mxu0
  %v102 = vadd.f32 0.0, %v101
  %v103 = vpop.f32.mrf.mxu0
  %104 = vmatprep.mubr.f32.mxu0 0.0
  %105 = vmatmul.mubr.f32.gmra.mxu0 %v18
  %v106 = vpop.f32.mrf.mxu0
  %v107 = vadd.f32 0.0, %v106
  %v108 = vpop.f32.mrf.mxu0
  %109 = vdwg.mxu0
  %v110 = vld [vmem:[%s2] sm:$0xff]
  %v111 = vld [vmem:[%s2 + $0x8] sm:$0xff]
  %v112 = vld [vmem:[%s2 + $0x10] sm:$0xff]
  %v113 = vld [vmem:[%s2 + $0x18] sm:$0xff]
  %v114 = vld [vmem:[%s2 + $0x20] sm:$0xff]
  %v115 = vld [vmem:[%s2 + $0x28] sm:$0xff]
  %v116 = vld [vmem:[%s2 + $0x30] sm:$0xff]
  %v117 = vld [vmem:[%s2 + $0x38] sm:$0xff]
  %v118 = vld [vmem:[%s2 + $0x40] sm:$0xff]
  %v119 = vld [vmem:[%s2 + $0x48] sm:$0xff]
  %v120 = vld [vmem:[%s2 + $0x50] sm:$0xff]
  %v121 = vld [vmem:[%s2 + $0x58] sm:$0xff]
  %v122 = vld [vmem:[%s2 + $0x60] sm:$0xff]
  %v123 = vld [vmem:[%s2 + $0x68] sm:$0xff]
  %v124 = vld [vmem:[%s2 + $0x70] sm:$0xff]
  %v125 = vld [vmem:[%s2 + $0x78] sm:$0xff]
  %126 = vmatprep.subr.mxu0 0.0
  %127 = vmatpush1.msra.mxu0 %v125
  %128 = vmatprep.subr.mxu0 0.0
  %129 = vmatpush1.msra.mxu0 %v124
  %130 = vmatprep.subr.mxu0 0.0
  %131 = vmatpush1.msra.mxu0 %v123
  %132 = vmatprep.subr.mxu0 0.0
  %133 = vmatpush1.msra.mxu0 %v122
  %134 = vmatprep.subr.mxu0 0.0
  %135 = vmatpush1.msra.mxu0 %v121
  %136 = vmatprep.subr.mxu0 0.0
  %137 = vmatpush1.msra.mxu0 %v120
  %138 = vmatprep.subr.mxu0 0.0
  %139 = vmatpush1.msra.mxu0 %v119
  %140 = vmatprep.subr.mxu0 0.0
  %141 = vmatpush1.msra.mxu0 %v118
  %142 = vmatprep.subr.mxu0 0.0
  %143 = vmatpush1.msra.mxu0 %v117
  %144 = vmatprep.subr.mxu0 0.0
  %145 = vmatpush1.msra.mxu0 %v116
  %146 = vmatprep.subr.mxu0 0.0
  %147 = vmatpush1.msra.mxu0 %v115
  %148 = vmatprep.subr.mxu0 0.0
  %149 = vmatpush1.msra.mxu0 %v114
  %150 = vmatprep.subr.mxu0 0.0
  %151 = vmatpush1.msra.mxu0 %v113
  %152 = vmatprep.subr.mxu0 0.0
  %153 = vmatpush1.msra.mxu0 %v112
  %154 = vmatprep.subr.mxu0 0.0
  %155 = vmatpush1.msra.mxu0 %v111
  %156 = vmatprep.subr.mxu0 0.0
  %157 = vmatpush1.msra.mxu0 %v110
  %158 = vmatprep.subr.mxu0 0.0
  %159 = vmatpush2.msra.mxu0 0.0
  %160 = vmatprep.subr.mxu0 0.0
  %161 = vmatpush2.msra.mxu0 0.0
  %162 = vmatprep.subr.mxu0 0.0
  %163 = vmatpush2.msra.mxu0 0.0
  %164 = vmatprep.subr.mxu0 0.0
  %165 = vmatpush2.msra.mxu0 0.0
  %166 = vmatprep.subr.mxu0 0.0
  %167 = vmatpush2.msra.mxu0 0.0
  %168 = vmatprep.subr.mxu0 0.0
  %169 = vmatpush2.msra.mxu0 0.0
  %170 = vmatprep.subr.mxu0 0.0
  %171 = vmatpush2.msra.mxu0 0.0
  %172 = vmatprep.subr.mxu0 0.0
  %173 = vmatpush2.msra.mxu0 0.0
  %174 = vmatprep.subr.mxu0 0.0
  %175 = vmatpush2.msra.mxu0 0.0
  %176 = vmatprep.subr.mxu0 0.0
  %177 = vmatpush2.msra.mxu0 0.0
  %178 = vmatprep.subr.mxu0 0.0
  %179 = vmatpush2.msra.mxu0 0.0
  %180 = vmatprep.subr.mxu0 0.0
  %181 = vmatpush2.msra.mxu0 0.0
  %182 = vmatprep.subr.mxu0 0.0
  %183 = vmatpush2.msra.mxu0 0.0
  %184 = vmatprep.subr.mxu0 0.0
  %185 = vmatpush2.msra.mxu0 0.0
  %186 = vmatprep.subr.mxu0 0.0
  %187 = vmatpush2.msra.mxu0 0.0
  %188 = vmatprep.subr.mxu0 0.0
  %189 = vmatpush2.msra.mxu0 0.0
  %190 = vmatprep.mubr.f32.mxu0 0.0
  %191 = vmatmul.mubr.f32.gmra.mxu0 %v17
  %v192 = vpop.f32.mrf.mxu0
  %v193 = vadd.f32 0.0, %v192
  %v194 = vpop.f32.mrf.mxu0
  %195 = vmatprep.mubr.f32.mxu0 0.0
  %196 = vmatmul.mubr.f32.gmra.mxu0 %v18
  %v197 = vpop.f32.mrf.mxu0
  %v198 = vadd.f32 0.0, %v197
  %v199 = vpop.f32.mrf.mxu0
  %200 = vdwg.mxu0
  %v201 = vxor.u32 %v102, 2147483648
  %v202 = vxor.u32 %v107, 2147483648
  %v203 = vmul.f32 %v201, 1.442695
  %v204 = vpow.pop %v203
  %v205 = vmul.f32 %v202, 1.442695
  %v206 = vpow.pop %v205
  %v207 = vadd.f32 %v204, 1.0
  %v208 = vadd.f32 %v206, 1.0
  %v209 = vrcp.pop %v207
  %v210 = vmul.f32 1.0, %v209
  %v211 = vrcp.pop %v208
  %v212 = vmul.f32 1.0, %v211
  %v213 = vmul.f32 %v102, %v210
  %v214 = vmul.f32 %v107, %v212
  %v215 = vmul.f32 %v213, %v193
  %v216 = vmul.f32 %v214, %v198
  %v217 = vld [vmem:[%s3] sm:$0xff]
  %v218 = vld [vmem:[%s3 + $0x8] sm:$0xff]
  %v219 = vld [vmem:[%s3 + $0x10] sm:$0xff]
  %v220 = vld [vmem:[%s3 + $0x18] sm:$0xff]
  %v221 = vld [vmem:[%s3 + $0x20] sm:$0xff]
  %v222 = vld [vmem:[%s3 + $0x28] sm:$0xff]
  %v223 = vld [vmem:[%s3 + $0x30] sm:$0xff]
  %v224 = vld [vmem:[%s3 + $0x38] sm:$0xff]
  %v225 = vld [vmem:[%s3 + $0x40] sm:$0xff]
  %v226 = vld [vmem:[%s3 + $0x48] sm:$0xff]
  %v227 = vld [vmem:[%s3 + $0x50] sm:$0xff]
  %v228 = vld [vmem:[%s3 + $0x58] sm:$0xff]
  %v229 = vld [vmem:[%s3 + $0x60] sm:$0xff]
  %v230 = vld [vmem:[%s3 + $0x68] sm:$0xff]
  %v231 = vld [vmem:[%s3 + $0x70] sm:$0xff]
  %v232 = vld [vmem:[%s3 + $0x78] sm:$0xff]
  %233 = vmatprep.subr.mxu0 0.0
  %234 = vmatpush1.msra.mxu0 %v232
  %235 = vmatprep.subr.mxu0 0.0
  %236 = vmatpush1.msra.mxu0 %v231
  %237 = vmatprep.subr.mxu0 0.0
  %238 = vmatpush1.msra.mxu0 %v230
  %239 = vmatprep.subr.mxu0 0.0
  %240 = vmatpush1.msra.mxu0 %v229
  %241 = vmatprep.subr.mxu0 0.0
  %242 = vmatpush1.msra.mxu0 %v228
  %243 = vmatprep.subr.mxu0 0.0
  %244 = vmatpush1.msra.mxu0 %v227
  %245 = vmatprep.subr.mxu0 0.0
  %246 = vmatpush1.msra.mxu0 %v226
  %247 = vmatprep.subr.mxu0 0.0
  %248 = vmatpush1.msra.mxu0 %v225
  %249 = vmatprep.subr.mxu0 0.0
  %250 = vmatpush1.msra.mxu0 %v224
  %251 = vmatprep.subr.mxu0 0.0
  %252 = vmatpush1.msra.mxu0 %v223
  %253 = vmatprep.subr.mxu0 0.0
  %254 = vmatpush1.msra.mxu0 %v222
  %255 = vmatprep.subr.mxu0 0.0
  %256 = vmatpush1.msra.mxu0 %v221
  %257 = vmatprep.subr.mxu0 0.0
  %258 = vmatpush1.msra.mxu0 %v220
  %259 = vmatprep.subr.mxu0 0.0
  %260 = vmatpush1.msra.mxu0 %v219
  %261 = vmatprep.subr.mxu0 0.0
  %262 = vmatpush1.msra.mxu0 %v218
  %263 = vmatprep.subr.mxu0 0.0
  %264 = vmatpush1.msra.mxu0 %v217
  %265 = vmatprep.subr.mxu0 0.0
  %266 = vmatpush2.msra.mxu0 0.0
  %267 = vmatprep.subr.mxu0 0.0
  %268 = vmatpush2.msra.mxu0 0.0
  %269 = vmatprep.subr.mxu0 0.0
  %270 = vmatpush2.msra.mxu0 0.0
  %271 = vmatprep.subr.mxu0 0.0
  %272 = vmatpush2.msra.mxu0 0.0
  %273 = vmatprep.subr.mxu0 0.0
  %274 = vmatpush2.msra.mxu0 0.0
  %275 = vmatprep.subr.mxu0 0.0
  %276 = vmatpush2.msra.mxu0 0.0
  %277 = vmatprep.subr.mxu0 0.0
  %278 = vmatpush2.msra.mxu0 0.0
  %279 = vmatprep.subr.mxu0 0.0
  %280 = vmatpush2.msra.mxu0 0.0
  %281 = vmatprep.subr.mxu0 0.0
  %282 = vmatpush2.msra.mxu0 0.0
  %283 = vmatprep.subr.mxu0 0.0
  %284 = vmatpush2.msra.mxu0 0.0
  %285 = vmatprep.subr.mxu0 0.0
  %286 = vmatpush2.msra.mxu0 0.0
  %287 = vmatprep.subr.mxu0 0.0
  %288 = vmatpush2.msra.mxu0 0.0
  %289 = vmatprep.subr.mxu0 0.0
  %290 = vmatpush2.msra.mxu0 0.0
  %291 = vmatprep.subr.mxu0 0.0
  %292 = vmatpush2.msra.mxu0 0.0
  %293 = vmatprep.subr.mxu0 0.0
  %294 = vmatpush2.msra.mxu0 0.0
  %295 = vmatprep.subr.mxu0 0.0
  %296 = vmatpush2.msra.mxu0 0.0
  %297 = vmatprep.mubr.f32.mxu0 0.0
  %298 = vmatmul.mubr.f32.gmra.mxu0 %v215
  %v299 = vpop.f32.mrf.mxu0
  %v300 = vadd.f32 0.0, %v299
  %v301 = vpop.f32.mrf.mxu0
  %302 = vmatprep.mubr.f32.mxu0 0.0
  %303 = vmatmul.mubr.f32.gmra.mxu0 %v216
  %v304 = vpop.f32.mrf.mxu0
  %v305 = vadd.f32 0.0, %v304
  %v306 = vpop.f32.mrf.mxu0
  %307 = vdwg.mxu0
  %p308 = scmp.eq.s32.totalorder 0, 0
  // Predicated region
  $region18: #{feed_forward.1} parent=0 // pred_check
    %p309 = pneg %p308
  $region19: #{feed_forward.1} parent=0 // pred_check_branch
    %311 = sbr.rel (%p309) target = $region21
  $region20: #{feed_forward.1} parent=0 // pred_region
    %312 = vst [vmem:[#allocation2] sm:$0xff] %v300
    %313 = vst [vmem:[#allocation2 + $0x8] sm:$0xff] %v305
  $region21: #{feed_forward.1} parent=0 // pred_fallthru
    _
  %p314 = scmp.ne.s32.totalorder 0, 0
  // Predicated region
  $region22: #{feed_forward.1} parent=0 // pred_check
    %p315 = pneg %p314
  $region23: #{feed_forward.1} parent=0 // pred_check_branch
    %317 = sbr.rel (%p315) target = $region25
  $region24: #{feed_forward.1} parent=0 // pred_region
    %v318 = vld [vmem:[#allocation2] sm:$0xff]
    %v319 = vld [vmem:[#allocation2 + $0x8] sm:$0xff]
    %v320 = vadd.f32 %v318, %v300
    %v321 = vadd.f32 %v319, %v305
    %322 = vst [vmem:[#allocation2] sm:$0xff] %v320
    %323 = vst [vmem:[#allocation2 + $0x8] sm:$0xff] %v321
  $region25: #{feed_forward.1} parent=0 // pred_fallthru
    _
  // Predicated region
  $region26: #{feed_forward.1} parent=0 // pred_check
    %p324 = pneg %p308
  $region27: #{feed_forward.1} parent=0 // pred_check_branch
    %326 = sbr.rel (%p324) target = $region29
  $region28: #{feed_forward.1} parent=0 // pred_region
    %v327 = vld [vmem:[#allocation2] sm:$0xff]
    %v328 = vld [vmem:[#allocation2 + $0x8] sm:$0xff]
    %329 = vst [vmem:[%s4] sm:$0xff] %v327
    %330 = vst [vmem:[%s4 + $0x8] sm:$0xff] %v328
  $region29: #{feed_forward.1} parent=0 // pred_fallthru
    _
  // Predicated region
  $region30: #{feed_forward.1} parent=0 // pred_check
    _
  $region31: #{feed_forward.1} parent=0 // pred_check_branch
    %332 = sbr.rel (0) target = $region33
  $region32: #{feed_forward.1} parent=0 // pred_region
    _
  $region33: #{feed_forward.1} parent=0 // pred_fallthru
    _
  // Predicated region
  $region34: #{feed_forward.1} parent=0 // pred_check
    _
  $region35: #{feed_forward.1} parent=0 // pred_check_branch
    %334 = sbr.rel (0) target = $region37
  $region36: #{feed_forward.1} parent=0 // pred_region
    _
  $region37: #{feed_forward.1} parent=0 // pred_fallthru
    _

</llo_original>
